<compile_context>
chip_gen: v5e
topology: v5e:2x2
jax: 0.10.0
libtpu: 0.0.40
codegen_flags: <defaults>
</compile_context>

<pallas_src>
from functools import partial

import numpy as np
import jax
import jax.numpy as jnp
from jax.experimental import pallas as pl
from jax.experimental.pallas import tpu as pltpu


# ----------------------------------------------------------------------------
# small helpers
# ----------------------------------------------------------------------------
def _round_up(n, m):
    return ((n + m - 1) // m) * m


def _cdiv(a, b):
    return -(-a // b)


def _choose_tn(n, tn_max=1024, min_steps=4, tiny=256):
    """Pick the point-dimension tile.  Bigger tiles amortize the ~0.35us/step
    grid overhead; for large N keep >= min_steps tiles so the 'parallel' axis
    can be sharded across v7x's 2 TensorCores; deriving the tile from N avoids
    pathological padding (e.g. N=520 -> Npad=1024)."""
    n16 = _round_up(n, 16)                      # bf16 sublane packing
    if n16 <= tiny:
        return n16                              # tiny problem: one tile
    steps = max(min_steps, _cdiv(n16, tn_max))
    return _round_up(_cdiv(n16, steps), 16)


def _compiler_params(vmem_need_bytes):
    """Explicit scoped-VMEM budget: v5e defaults to 16 MiB (v6e/v7x 32 MiB),
    so larger N tiles need the limit raised; cap well under v7x's 64 MiB
    physical VMEM to leave headroom."""
    limit = int(min(max(32 << 20, 2 * vmem_need_bytes), 48 << 20))
    return pltpu.CompilerParams(dimension_semantics=("parallel",),
                                vmem_limit_bytes=limit)


# ----------------------------------------------------------------------------
# Pallas kernels
# ----------------------------------------------------------------------------
def _conv1_kernel(xg_ref, w1_ref, sh1_ref, y1_ref):
    """y1 = relu(xg @ W1' + shift1), BN1 scale folded into W1'.
    bf16 streams, f32 MXU accumulate, bf16 output (re-gathered by conv2)."""
    acc = jnp.dot(xg_ref[...], w1_ref[...], preferred_element_type=jnp.float32)
    y1_ref[...] = jnp.maximum(acc + sh1_ref[...], 0.0).astype(y1_ref.dtype)


def _conv2_sc_kernel(xg_ref, x_ref, w2_ref, ws_ref, sh_ref, o_ref):
    """out = relu(xg @ W2' + x @ Ws' + (shift2 + shifts)).
    Main path conv2+BN2 and the 1x1-conv+BNs shortcut are fused, so the
    shortcut never round-trips through HBM."""
    acc = jnp.dot(xg_ref[...], w2_ref[...], preferred_element_type=jnp.float32)
    acc = acc + jnp.dot(x_ref[...], ws_ref[...],
                        preferred_element_type=jnp.float32)
    o_ref[...] = jnp.maximum(acc + sh_ref[...], 0.0)


def _conv1_call(xg, w1f, shift1, tn):
    """xg: [Npad, K*Cin] bf16, w1f: [K*Cin, Cout] bf16, shift1: [1, Cout] f32.
    Returns y1: [Npad, Cout] bf16."""
    Npad, KC = xg.shape
    Cout = w1f.shape[-1]
    assert Npad % tn == 0
    # double-buffered streamed tile + weights + shift + output tile
    need = 2 * (tn * KC * 2 + KC * Cout * 2 + Cout * 4 + tn * Cout * 2)
    return pl.pallas_call(
        _conv1_kernel,
        out_shape=jax.ShapeDtypeStruct((Npad, Cout), jnp.bfloat16),
        grid_spec=pltpu.PrefetchScalarGridSpec(
            num_scalar_prefetch=0,
            grid=(Npad // tn,),
            in_specs=[
                pl.BlockSpec((tn, KC), lambda i: (i, 0)),    # gathered acts
                pl.BlockSpec((KC, Cout), lambda i: (0, 0)),  # folded weights
                pl.BlockSpec((1, Cout), lambda i: (0, 0)),   # BN shift
            ],
            out_specs=pl.BlockSpec((tn, Cout), lambda i: (i, 0)),
        ),
        compiler_params=_compiler_params(need),
    )(xg, w1f, shift1)


def _conv2_call(xg, x, w2f, wsf, shift, tn):
    """xg: [Npad, K*Cout] bf16, x: [Npad, Cin] bf16, w2f: [K*Cout, Cout] bf16,
    wsf: [Cin, Cout] bf16, shift: [1, Cout] f32 (shift2 + shifts combined).
    Returns relu(main + shortcut): [Npad, Cout] f32."""
    Npad, KC = xg.shape
    Cin = x.shape[-1]
    Cout = w2f.shape[-1]
    assert Npad % tn == 0
    need = 2 * (tn * KC * 2 + tn * Cin * 2 + KC * Cout * 2 + Cin * Cout * 2
                + Cout * 4 + tn * Cout * 4)
    return pl.pallas_call(
        _conv2_sc_kernel,
        out_shape=jax.ShapeDtypeStruct((Npad, Cout), jnp.float32),
        grid_spec=pltpu.PrefetchScalarGridSpec(
            num_scalar_prefetch=0,
            grid=(Npad // tn,),
            in_specs=[
                pl.BlockSpec((tn, KC), lambda i: (i, 0)),    # gathered y1
                pl.BlockSpec((tn, Cin), lambda i: (i, 0)),   # x for shortcut
                pl.BlockSpec((KC, Cout), lambda i: (0, 0)),  # conv2 weights
                pl.BlockSpec((Cin, Cout), lambda i: (0, 0)),  # shortcut weights
                pl.BlockSpec((1, Cout), lambda i: (0, 0)),   # combined shift
            ],
            out_specs=pl.BlockSpec((tn, Cout), lambda i: (i, 0)),
        ),
        compiler_params=_compiler_params(need),
    )(xg, x, w2f, wsf, shift)


# ----------------------------------------------------------------------------
# Host-side glue: kernel map (neighbor indices) for a submanifold sparse conv
# ----------------------------------------------------------------------------
_KMAP_CACHE = {}


def build_kernel_map(coords_np, kernel_size):
    """coords_np: [N, 4] int (b, x, y, z).  Returns nbr: [N, K] int32 with
    value N (the appended zero row) for missing neighbors.  Vectorized via
    integer key packing + sort + searchsorted; cached for static point clouds."""
    key = (coords_np.shape, str(coords_np.dtype), coords_np.tobytes(),
           int(kernel_size))
    cached = _KMAP_CACHE.get(key)
    if cached is not None:
        return cached

    coords = np.asarray(coords_np, dtype=np.int64)
    N = coords.shape[0]
    r = kernel_size // 2
    offsets = np.array([(dx, dy, dz)
                        for dx in range(-r, r + 1)
                        for dy in range(-r, r + 1)
                        for dz in range(-r, r + 1)], dtype=np.int64)
    K = offsets.shape[0]

    b = coords[:, 0]
    xyz = coords[:, 1:]
    assert xyz.min() >= 0 and b.min() >= 0, "negative voxel coords unsupported"
    xyz = xyz + r                                # shifted so coord+offset >= 0
    span = int(xyz.max()) + r + 2
    # guard against packed-key overflow for huge grids / batches
    assert (int(b.max()) + 1) * span * span * span < 2 ** 62, "key overflow"

    def pack(bb, p):
        return ((bb * span + p[:, 0]) * span + p[:, 1]) * span + p[:, 2]

    keys = pack(b, xyz)
    order = np.argsort(keys, kind="stable")
    skeys = keys[order]

    nbr = np.full((N, K), N, dtype=np.int32)
    for ki in range(K):
        qk = pack(b, xyz + offsets[ki])
        pos = np.searchsorted(skeys, qk)
        pos_c = np.minimum(pos, N - 1)
        hit = skeys[pos_c] == qk
        nbr[:, ki] = np.where(hit, order[pos_c].astype(np.int32), np.int32(N))

    _KMAP_CACHE[key] = nbr
    return nbr


def _fold_bn(gamma, beta, mean, var, eps=1e-5):
    scale = gamma / jnp.sqrt(var + eps)
    shift = beta - mean * scale
    return scale[None, :], shift[None, :]


# ----------------------------------------------------------------------------
# SparseResBlock forward
#   main     = BN2(conv2(ReLU(BN1(conv1(x)))))
#   shortcut = BNs(conv1x1(x))          (in_channels != out_channels here)
#   out      = ReLU(main + shortcut)
# conv3d in PCEngine carries no bias; BatchNorm is applied in eval mode.
# ----------------------------------------------------------------------------
@partial(jax.jit, static_argnames=("tn",))
def _forward_device(feats, nbr, w1f, w2f, wsf, shift1, shift2s, *, tn):
    N, Cin = feats.shape
    Npad, K = nbr.shape
    Cout = w1f.shape[-1]

    feats_bf = feats.astype(jnp.bfloat16)

    # conv1 gather: index N of the padded table is the zero row, so missing
    # neighbors (and the Npad-N pad rows, whose nbr entries are all N)
    # contribute zeros.  The gather emits the final [Npad, K*Cin] bf16 layout
    # directly (no extra jnp.pad copy).
    f1 = jnp.concatenate([feats_bf, jnp.zeros((1, Cin), jnp.bfloat16)], axis=0)
    xg1 = f1[nbr].reshape(Npad, K * Cin)
    y1 = _conv1_call(xg1, w1f, shift1, tn)                 # [Npad, Cout] bf16

    # conv2 gather from y1: slice back to the N real rows before appending the
    # zero row so missing-neighbor index N still lands on zeros (the pad rows
    # of y1 hold relu(shift1), not zeros).
    f2 = jnp.concatenate([y1[:N], jnp.zeros((1, Cout), jnp.bfloat16)], axis=0)
    xg2 = f2[nbr].reshape(Npad, K * Cout)

    x_pad = jnp.pad(feats_bf, ((0, Npad - N), (0, 0)))     # shortcut 1x1 input
    out = _conv2_call(xg2, x_pad, w2f, wsf, shift2s, tn)    # [Npad, Cout] f32
    return out[:N]


def sparse_res_block_forward(feats, coords_np, params, kernel_size):
    N, Cin = feats.shape
    K = kernel_size ** 3
    Cout = params["w1"].shape[-1]

    tn = _choose_tn(N)
    Npad = _round_up(N, tn)

    nbr = build_kernel_map(coords_np, kernel_size)              # [N, K] int32
    nbr = np.pad(nbr, ((0, Npad - N), (0, 0)), constant_values=N)
    nbr = jnp.asarray(nbr)                                      # [Npad, K]

    # Fold eval-mode BatchNorm scale into the conv weights (bf16 streams);
    # main-path and shortcut shifts combine into a single epilogue constant.
    w1f = (params["w1"] * params["scale1"][None]).reshape(K * Cin, Cout)
    w2f = (params["w2"] * params["scale2"][None]).reshape(K * Cout, Cout)
    wsf = params["ws"][0] * params["scales"]
    w1f, w2f, wsf = (w.astype(jnp.bfloat16) for w in (w1f, w2f, wsf))
    shift2s = params["shift2"] + params["shifts"]

    return _forward_device(feats, nbr, w1f, w2f, wsf,
                           params["shift1"], shift2s, tn=tn)


# ----------------------------------------------------------------------------
# Pure-JAX f32 reference (same eval-mode folded-BN semantics)
# ----------------------------------------------------------------------------
def _reference_forward(feats, nbr_n, params, K):
    N, Cin = feats.shape
    Cout = params["w1"].shape[-1]
    f1 = jnp.concatenate([feats, jnp.zeros((1, Cin), feats.dtype)], 0)
    xg1 = f1[nbr_n].reshape(N, K * Cin)
    w1f = (params["w1"] * params["scale1"][None]).reshape(K * Cin, Cout)
    y1 = jnp.maximum(xg1 @ w1f + params["shift1"], 0.0)
    f2 = jnp.concatenate([y1, jnp.zeros((1, Cout), y1.dtype)], 0)
    xg2 = f2[nbr_n].reshape(N, K * Cout)
    w2f = (params["w2"] * params["scale2"][None]).reshape(K * Cout, Cout)
    main = xg2 @ w2f + params["shift2"]
    sc = feats @ (params["ws"][0] * params["scales"]) + params["shifts"]
    return jnp.maximum(main + sc, 0.0)


# ----------------------------------------------------------------------------
# Deterministic parameter init (shapes from SparseResBlock.__init__)
# ----------------------------------------------------------------------------
def init_params(key, Cin, Cout, kernel_size):
    K = kernel_size ** 3
    ks = jax.random.split(key, 9)
    w1 = jax.random.normal(ks[0], (K, Cin, Cout), jnp.float32) * 0.1
    w2 = jax.random.normal(ks[1], (K, Cout, Cout), jnp.float32) * 0.1
    ws = jax.random.normal(ks[2], (1, Cin, Cout), jnp.float32) * 0.1

    def bn(kg, kb, km, kv):
        gamma = 1.0 + 0.1 * jax.random.normal(kg, (Cout,), jnp.float32)
        beta = 0.1 * jax.random.normal(kb, (Cout,), jnp.float32)
        mean = 0.1 * jax.random.normal(km, (Cout,), jnp.float32)
        var = jnp.abs(1.0 + 0.1 * jax.random.normal(kv, (Cout,), jnp.float32))
        return _fold_bn(gamma, beta, mean, var)

    s1, b1 = bn(*jax.random.split(ks[3], 4))
    s2, b2 = bn(*jax.random.split(ks[4], 4))
    ss, bs = bn(*jax.random.split(ks[5], 4))
    return dict(w1=w1, w2=w2, ws=ws,
                scale1=s1, shift1=b1,
                scale2=s2, shift2=b2,
                scales=ss, shifts=bs)


if __name__ == "__main__":
    Cin, Cout, kernel_size = 4, 8, 3
    batch, spatial, pts_per_batch = 2, 8, 20

    # deterministic sparse coordinates (unique per batch)
    rng = np.random.default_rng(0)
    coords_list = []
    for b in range(batch):
        flat = rng.choice(spatial ** 3, size=pts_per_batch, replace=False)
        x = flat // (spatial * spatial)
        y = (flat // spatial) % spatial
        z = flat % spatial
        coords_list.append(np.stack([np.full_like(x, b), x, y, z], axis=1))
    coords_np = np.concatenate(coords_list, axis=0).astype(np.int32)   # [N, 4]
    N = coords_np.shape[0]

    key = jax.random.PRNGKey(0)
    kf, kp = jax.random.split(key)
    feats = jax.random.normal(kf, (N, Cin), jnp.float32)
    params = init_params(kp, Cin, Cout, kernel_size)

    out = sparse_res_block_forward(feats, coords_np, params, kernel_size)
    out = jax.block_until_ready(out)

    # correctness vs a pure-JAX f32 reference (bf16 streams => loose tolerance)
    K = kernel_size ** 3
    nbr_n = jnp.asarray(build_kernel_map(coords_np, kernel_size))
    ref = _reference_forward(feats, nbr_n, params, K)
    max_err = float(jnp.max(jnp.abs(out - ref)))

    assert out.shape == (N, Cout)
    assert bool(jnp.all(out >= 0.0))          # final ReLU
    assert bool(jnp.all(jnp.isfinite(out)))
    assert max_err < 0.15, f"max abs error vs f32 reference: {max_err}"
    print("KERNEL_OK")
</pallas_src>

<mosaic_0001>
module attributes {stable_mosaic.version = 11 : i64} {
  func.func @_conv1_kernel(%arg0: i32, %arg1: memref<48x108xbf16, #tpu.memory_space<vmem>>, %arg2: memref<108x8xbf16, #tpu.memory_space<vmem>>, %arg3: memref<1x8xf32, #tpu.memory_space<vmem>>, %arg4: memref<48x8xbf16, #tpu.memory_space<vmem>>) attributes {dimension_semantics = [#tpu.dimension_semantics<parallel>], iteration_bounds = array<i64: 1>, scalar_prefetch = 0 : i64, scratch_operands = 0 : i64, tpu.core_type = #tpu.core_type<tc>, window_params = [{transform_indices = @transform_0, window_bounds = array<i64: 48, 108>}, {pipeline_mode = #tpu.pipeline_mode<synchronous>, transform_indices = @transform_1, window_bounds = array<i64: 108, 8>}, {pipeline_mode = #tpu.pipeline_mode<synchronous>, transform_indices = @transform_2, window_bounds = array<i64: 1, 8>}, {transform_indices = @transform_3, window_bounds = array<i64: 48, 8>}]} {
    %c0 = arith.constant 0 : index
    %c0_0 = arith.constant 0 : index
    %0 = vector.load %arg1[%c0, %c0_0] : memref<48x108xbf16, #tpu.memory_space<vmem>>, vector<48x108xbf16>
    %c0_1 = arith.constant 0 : index
    %c0_2 = arith.constant 0 : index
    %1 = vector.load %arg2[%c0_1, %c0_2] : memref<108x8xbf16, #tpu.memory_space<vmem>>, vector<108x8xbf16>
    %cst = arith.constant dense<0.000000e+00> : vector<48x8xf32>
    %2 = tpu.matmul %0, %1, %cst {dimension_numbers = #tpu.dot_dimension_numbers<[1], [0], [0], [1], [0, 0, 1, 1], [], []>} : vector<48x108xbf16>, vector<108x8xbf16>, vector<48x8xf32> -> vector<48x8xf32>
    %c0_3 = arith.constant 0 : index
    %c0_4 = arith.constant 0 : index
    %3 = vector.load %arg3[%c0_3, %c0_4] : memref<1x8xf32, #tpu.memory_space<vmem>>, vector<1x8xf32>
    %4 = vector.broadcast %3 : vector<1x8xf32> to vector<48x8xf32>
    %5 = arith.addf %2, %4 : vector<48x8xf32>
    %cst_5 = arith.constant 0.000000e+00 : f32
    %6 = vector.broadcast %cst_5 : f32 to vector<48x8xf32>
    %7 = arith.maximumf %5, %6 : vector<48x8xf32>
    %8 = arith.truncf %7 : vector<48x8xf32> to vector<48x8xbf16>
    %c0_6 = arith.constant 0 : index
    %c0_7 = arith.constant 0 : index
    %9 = vector.load %arg4[%c0_6, %c0_7] : memref<48x8xbf16, #tpu.memory_space<vmem>>, vector<48x8xbf16>
    tpu.vector_store %arg4[%c0_6, %c0_7], %8 {strides = array<i32>} : memref<48x8xbf16, #tpu.memory_space<vmem>>, vector<48x8xbf16>,
    return
  }
  func.func @transform_0(%arg0: i32) -> (i32, i32) {
    %c0_i32 = arith.constant 0 : i32
    %c0_i32_0 = arith.constant 0 : i32
    return %arg0, %c0_i32 : i32, i32
  }
  func.func @transform_1(%arg0: i32) -> (i32, i32) {
    %c0_i32 = arith.constant 0 : i32
    %c0_i32_0 = arith.constant 0 : i32
    %c0_i32_1 = arith.constant 0 : i32
    return %c0_i32, %c0_i32_0 : i32, i32
  }
  func.func @transform_2(%arg0: i32) -> (i32, i32) {
    %c0_i32 = arith.constant 0 : i32
    %c0_i32_0 = arith.constant 0 : i32
    %c0_i32_1 = arith.constant 0 : i32
    return %c0_i32, %c0_i32_0 : i32, i32
  }
  func.func @transform_3(%arg0: i32) -> (i32, i32) {
    %c0_i32 = arith.constant 0 : i32
    %c0_i32_0 = arith.constant 0 : i32
    return %arg0, %c0_i32 : i32, i32
  }
}

module attributes {stable_mosaic.version = 11 : i64} {
  func.func @_conv2_sc_kernel(%arg0: i32, %arg1: memref<48x216xbf16, #tpu.memory_space<vmem>>, %arg2: memref<48x4xbf16, #tpu.memory_space<vmem>>, %arg3: memref<216x8xbf16, #tpu.memory_space<vmem>>, %arg4: memref<4x8xbf16, #tpu.memory_space<vmem>>, %arg5: memref<1x8xf32, #tpu.memory_space<vmem>>, %arg6: memref<48x8xf32, #tpu.memory_space<vmem>>) attributes {dimension_semantics = [#tpu.dimension_semantics<parallel>], iteration_bounds = array<i64: 1>, scalar_prefetch = 0 : i64, scratch_operands = 0 : i64, tpu.core_type = #tpu.core_type<tc>, window_params = [{transform_indices = @transform_0, window_bounds = array<i64: 48, 216>}, {transform_indices = @transform_1, window_bounds = array<i64: 48, 4>}, {pipeline_mode = #tpu.pipeline_mode<synchronous>, transform_indices = @transform_2, window_bounds = array<i64: 216, 8>}, {pipeline_mode = #tpu.pipeline_mode<synchronous>, transform_indices = @transform_3, window_bounds = array<i64: 4, 8>}, {pipeline_mode = #tpu.pipeline_mode<synchronous>, transform_indices = @transform_4, window_bounds = array<i64: 1, 8>}, {transform_indices = @transform_5, window_bounds = array<i64: 48, 8>}]} {
    %c0 = arith.constant 0 : index
    %c0_0 = arith.constant 0 : index
    %0 = vector.load %arg1[%c0, %c0_0] : memref<48x216xbf16, #tpu.memory_space<vmem>>, vector<48x216xbf16>
    %c0_1 = arith.constant 0 : index
    %c0_2 = arith.constant 0 : index
    %1 = vector.load %arg3[%c0_1, %c0_2] : memref<216x8xbf16, #tpu.memory_space<vmem>>, vector<216x8xbf16>
    %cst = arith.constant dense<0.000000e+00> : vector<48x8xf32>
    %2 = tpu.matmul %0, %1, %cst {dimension_numbers = #tpu.dot_dimension_numbers<[1], [0], [0], [1], [0, 0, 1, 1], [], []>} : vector<48x216xbf16>, vector<216x8xbf16>, vector<48x8xf32> -> vector<48x8xf32>
    %c0_3 = arith.constant 0 : index
    %c0_4 = arith.constant 0 : index
    %3 = vector.load %arg2[%c0_3, %c0_4] : memref<48x4xbf16, #tpu.memory_space<vmem>>, vector<48x4xbf16>
    %c0_5 = arith.constant 0 : index
    %c0_6 = arith.constant 0 : index
    %4 = vector.load %arg4[%c0_5, %c0_6] : memref<4x8xbf16, #tpu.memory_space<vmem>>, vector<4x8xbf16>
    %cst_7 = arith.constant dense<0.000000e+00> : vector<48x8xf32>
    %5 = tpu.matmul %3, %4, %cst_7 {dimension_numbers = #tpu.dot_dimension_numbers<[1], [0], [0], [1], [0, 0, 1, 1], [], []>} : vector<48x4xbf16>, vector<4x8xbf16>, vector<48x8xf32> -> vector<48x8xf32>
    %6 = arith.addf %2, %5 : vector<48x8xf32>
    %c0_8 = arith.constant 0 : index
    %c0_9 = arith.constant 0 : index
    %7 = vector.load %arg5[%c0_8, %c0_9] : memref<1x8xf32, #tpu.memory_space<vmem>>, vector<1x8xf32>
    %8 = vector.broadcast %7 : vector<1x8xf32> to vector<48x8xf32>
    %9 = arith.addf %6, %8 : vector<48x8xf32>
    %cst_10 = arith.constant 0.000000e+00 : f32
    %10 = vector.broadcast %cst_10 : f32 to vector<48x8xf32>
    %11 = arith.maximumf %9, %10 : vector<48x8xf32>
    %c0_11 = arith.constant 0 : index
    %c0_12 = arith.constant 0 : index
    %12 = vector.load %arg6[%c0_11, %c0_12] : memref<48x8xf32, #tpu.memory_space<vmem>>, vector<48x8xf32>
    tpu.vector_store %arg6[%c0_11, %c0_12], %11 {strides = array<i32>} : memref<48x8xf32, #tpu.memory_space<vmem>>, vector<48x8xf32>,
    return
  }
  func.func @transform_0(%arg0: i32) -> (i32, i32) {
    %c0_i32 = arith.constant 0 : i32
    %c0_i32_0 = arith.constant 0 : i32
    return %arg0, %c0_i32 : i32, i32
  }
  func.func @transform_1(%arg0: i32) -> (i32, i32) {
    %c0_i32 = arith.constant 0 : i32
    %c0_i32_0 = arith.constant 0 : i32
    return %arg0, %c0_i32 : i32, i32
  }
  func.func @transform_2(%arg0: i32) -> (i32, i32) {
    %c0_i32 = arith.constant 0 : i32
    %c0_i32_0 = arith.constant 0 : i32
    %c0_i32_1 = arith.constant 0 : i32
    return %c0_i32, %c0_i32_0 : i32, i32
  }
  func.func @transform_3(%arg0: i32) -> (i32, i32) {
    %c0_i32 = arith.constant 0 : i32
    %c0_i32_0 = arith.constant 0 : i32
    %c0_i32_1 = arith.constant 0 : i32
    return %c0_i32, %c0_i32_0 : i32, i32
  }
  func.func @transform_4(%arg0: i32) -> (i32, i32) {
    %c0_i32 = arith.constant 0 : i32
    %c0_i32_0 = arith.constant 0 : i32
    %c0_i32_1 = arith.constant 0 : i32
    return %c0_i32, %c0_i32_0 : i32, i32
  }
  func.func @transform_5(%arg0: i32) -> (i32, i32) {
    %c0_i32 = arith.constant 0 : i32
    %c0_i32_0 = arith.constant 0 : i32
    return %arg0, %c0_i32 : i32, i32
  }
}

</mosaic_0001>

<llo_original>
// kernel: _forward_device.2
$region0: #{_forward_device.2}
  #allocation0 [shape = 'u32[]', space=smem, size = 0x4, offset = 0x4, fixed_abs, tag = 'smem constant byte address 0x4 - core index']
  #allocation1 [shape = 'u32[72,128]{1,0:T(1,128)}', space=vmem, size = 0x9000, scoped, tag = 'internal scratch']
  %s0 = inlined_call_operand.vmem [shape: bf16[48,108], index: 0, kind: input, shape index: {}]
  %s1 = inlined_call_operand.vmem [shape: bf16[108,8], index: 1, kind: input, shape index: {}]
  %s2 = inlined_call_operand.vmem [shape: f32[1,8], index: 2, kind: input, shape index: {}]
  %s3 = inlined_call_operand.vmem [shape: bf16[48,8], index: 3, kind: output, shape index: {}]
  %s4 = sld [smem:[#allocation0]]
  $region22: #{_forward_device.2} parent=0
    _
  %s6 = ssub.s32 1, %s4
  %s7 = scalar_select 0, %s6, %s4
  // Predicated region
  $region2: #{_forward_device.2} parent=0 // pred_check
    _
  $region3: #{_forward_device.2} parent=0 // pred_check_branch
    %9 = sbr.rel (0) target = $region5
  $region4: #{_forward_device.2} parent=0 // pred_region
    _
  $region5: #{_forward_device.2} parent=0 // pred_fallthru
    _
  // Predicated region
  $region6: #{_forward_device.2} parent=0 // pred_check
    _
  $region7: #{_forward_device.2} parent=0 // pred_check_branch
    %11 = sbr.rel (0) target = $region9
  $region8: #{_forward_device.2} parent=0 // pred_region
    _
  $region9: #{_forward_device.2} parent=0 // pred_fallthru
    _
  // Predicated region
  $region10: #{_forward_device.2} parent=0 // pred_check
    _
  $region11: #{_forward_device.2} parent=0 // pred_check_branch
    %13 = sbr.rel (0) target = $region13
  $region12: #{_forward_device.2} parent=0 // pred_region
    _
  $region13: #{_forward_device.2} parent=0 // pred_fallthru
    _
  %v15 = vld [vmem:[%s0] sm:$0xf]
  %v16 = vld [vmem:[%s0 + $0x4] sm:$0xf]
  %v17 = vld [vmem:[%s0 + $0x8] sm:$0xf]
  %v18 = vld [vmem:[%s0 + $0xc] sm:$0xf]
  %v19 = vld [vmem:[%s0 + $0x10] sm:$0xf]
  %v20 = vld [vmem:[%s0 + $0x14] sm:$0xf]
  %v21 = vld [vmem:[%s1] sm:$0xf]
  %v22 = vld [vmem:[%s1 + $0x4] sm:$0xf]
  %v23 = vld [vmem:[%s1 + $0x8] sm:$0xf]
  %v24 = vld [vmem:[%s1 + $0xc] sm:$0xf]
  %v25 = vld [vmem:[%s1 + $0x10] sm:$0xf]
  %v26 = vld [vmem:[%s1 + $0x14] sm:$0xf]
  %v27 = vld [vmem:[%s1 + $0x18] sm:$0xf]
  %v28 = vld [vmem:[%s1 + $0x1c] sm:$0xf]
  %v29 = vld [vmem:[%s1 + $0x20] sm:$0xf]
  %v30 = vld [vmem:[%s1 + $0x24] sm:$0xf]
  %v31 = vld [vmem:[%s1 + $0x28] sm:$0xf]
  %v32 = vld [vmem:[%s1 + $0x2c] sm:$0xf]
  %v33 = vld [vmem:[%s1 + $0x30] sm:$0xf]
  %v34 = vld [vmem:[%s1 + $0x34] sm:$0x3]
  %v35 = vld [vmem:[%s2] sm:$0x1]
  %v37 = vperm.slane %v35, 0
  %v45 = vunpack.c.l.b16 %v15
  %v46 = vunpack.c.l.b16 %v16
  %v47 = vunpack.c.l.b16 %v17
  %v48 = vunpack.c.l.b16 %v18
  %v49 = vunpack.c.l.b16 %v19
  %v50 = vunpack.c.l.b16 %v20
  %v51 = vpack.c.b16 %v46, %v45
  %v52 = vpack.c.b16 %v48, %v47
  %v53 = vpack.c.b16 %v50, %v49
  %v68 = vunpack.c.l.b16 %v21
  %v69 = vunpack.c.l.b16 %v22
  %v70 = vunpack.c.l.b16 %v23
  %v71 = vunpack.c.l.b16 %v24
  %v72 = vunpack.c.l.b16 %v25
  %v73 = vunpack.c.l.b16 %v26
  %v74 = vunpack.c.l.b16 %v27
  %v75 = vunpack.c.l.b16 %v28
  %v76 = vunpack.c.l.b16 %v29
  %v77 = vunpack.c.l.b16 %v30
  %v78 = vunpack.c.l.b16 %v31
  %v79 = vunpack.c.l.b16 %v32
  %v80 = vunpack.c.l.b16 %v33
  %v81 = vunpack.c.l.b16 %v34
  %v82 = vpack.c.b16 %v69, %v68
  %v83 = vpack.c.b16 %v71, %v70
  %v84 = vpack.c.b16 %v73, %v72
  %v85 = vpack.c.b16 %v75, %v74
  %v86 = vpack.c.b16 %v77, %v76
  %v87 = vpack.c.b16 %v79, %v78
  %v88 = vpack.c.b16 %v81, %v80
  %vm95 = vcmask 883712
  %v97 = vsel %vm95, %v51, 0
  %v100 = vsel %vm95, %v52, 0
  %v103 = vsel %vm95, %v53, 0
  %vm105 = vcmask 1045504
  %v107 = vsel %vm105, %v88, 0
  %109 = vmatpush.bf16.msra.mxu0 0
  %110 = vmatpush.bf16.msra.mxu0 %v107
  %111 = vmatpush.bf16.msra.mxu0 %v87
  %112 = vmatpush.bf16.msra.mxu0 %v86
  %113 = vmatpush.bf16.msra.mxu0 %v85
  %114 = vmatpush.bf16.msra.mxu0 %v84
  %115 = vmatpush.bf16.msra.mxu0 %v83
  %116 = vmatpush.bf16.msra.mxu0 %v82
  %117 = vmatmul.bf16.gmra.mxu0 %v97
  %v118 = vpop.f32.mrf.mxu0
  %v119 = vadd.f32 %v37, %v118
  %v120 = vpop.f32.mrf.mxu0
  %v121 = vadd.f32 %v37, %v120
  %122 = vmatmul.bf16.gmra.mxu0 %v100
  %v123 = vpop.f32.mrf.mxu0
  %v124 = vadd.f32 %v37, %v123
  %v125 = vpop.f32.mrf.mxu0
  %v126 = vadd.f32 %v37, %v125
  %127 = vmatmul.bf16.gmra.mxu0 %v103
  %v128 = vpop.f32.mrf.mxu0
  %v129 = vadd.f32 %v37, %v128
  %v130 = vpop.f32.mrf.mxu0
  %v131 = vadd.f32 %v37, %v130
  %132 = vdwg.mxu0
  %v133 = vmax.f32 %v119, 0.0
  %v134 = vmax.f32 %v121, 0.0
  %v135 = vmax.f32 %v124, 0.0
  %v136 = vmax.f32 %v126, 0.0
  %v137 = vmax.f32 %v129, 0.0
  %v138 = vmax.f32 %v131, 0.0
  %v139 = vpack.c.bf16 %v133, %v133
  %v140 = vpack.c.bf16 %v134, %v134
  %v141 = vpack.c.bf16 %v135, %v135
  %v142 = vpack.c.bf16 %v136, %v136
  %v143 = vpack.c.bf16 %v137, %v137
  %v144 = vpack.c.bf16 %v138, %v138
  %vm145 = vcmask 60416
  %146 = vst.msk [vmem:[%s3] sm:$0xf] %vm145, %v139
  %147 = vst.msk [vmem:[%s3 + $0x4] sm:$0xf] %vm145, %v140
  %148 = vst.msk [vmem:[%s3 + $0x8] sm:$0xf] %vm145, %v141
  %149 = vst.msk [vmem:[%s3 + $0xc] sm:$0xf] %vm145, %v142
  %150 = vst.msk [vmem:[%s3 + $0x10] sm:$0xf] %vm145, %v143
  %151 = vst.msk [vmem:[%s3 + $0x14] sm:$0xf] %vm145, %v144
  // Predicated region
  $region14: #{_forward_device.2} parent=0 // pred_check
    _
  $region15: #{_forward_device.2} parent=0 // pred_check_branch
    %153 = sbr.rel (0) target = $region17
  $region16: #{_forward_device.2} parent=0 // pred_region
    _
  $region17: #{_forward_device.2} parent=0 // pred_fallthru
    _
  // Predicated region
  $region18: #{_forward_device.2} parent=0 // pred_check
    _
  $region19: #{_forward_device.2} parent=0 // pred_check_branch
    %155 = sbr.rel (0) target = $region21
  $region20: #{_forward_device.2} parent=0 // pred_region
    _
  $region21: #{_forward_device.2} parent=0 // pred_fallthru
    _

// kernel: _forward_device.3
$region0: #{_forward_device.3}
  #allocation0 [shape = 'u32[]', space=smem, size = 0x4, offset = 0x4, fixed_abs, tag = 'smem constant byte address 0x4 - core index']
  #allocation1 [shape = 'u32[72,128]{1,0:T(1,128)}', space=vmem, size = 0x9000, scoped, tag = 'internal scratch']
  %s0 = inlined_call_operand.vmem [shape: bf16[48,216], index: 0, kind: input, shape index: {}]
  %s1 = inlined_call_operand.vmem [shape: bf16[48,4], index: 1, kind: input, shape index: {}]
  %s2 = inlined_call_operand.vmem [shape: bf16[216,8], index: 2, kind: input, shape index: {}]
  %s3 = inlined_call_operand.vmem [shape: bf16[4,8], index: 3, kind: input, shape index: {}]
  %s4 = inlined_call_operand.vmem [shape: f32[1,8], index: 4, kind: input, shape index: {}]
  %s5 = inlined_call_operand.vmem [shape: f32[48,8], index: 5, kind: output, shape index: {}]
  %s6 = sld [smem:[#allocation0]]
  $region30: #{_forward_device.3} parent=0
    _
  %s8 = ssub.s32 1, %s6
  %s9 = scalar_select 0, %s8, %s6
  // Predicated region
  $region2: #{_forward_device.3} parent=0 // pred_check
    _
  $region3: #{_forward_device.3} parent=0 // pred_check_branch
    %11 = sbr.rel (0) target = $region5
  $region4: #{_forward_device.3} parent=0 // pred_region
    _
  $region5: #{_forward_device.3} parent=0 // pred_fallthru
    _
  // Predicated region
  $region6: #{_forward_device.3} parent=0 // pred_check
    _
  $region7: #{_forward_device.3} parent=0 // pred_check_branch
    %13 = sbr.rel (0) target = $region9
  $region8: #{_forward_device.3} parent=0 // pred_region
    _
  $region9: #{_forward_device.3} parent=0 // pred_fallthru
    _
  // Predicated region
  $region10: #{_forward_device.3} parent=0 // pred_check
    _
  $region11: #{_forward_device.3} parent=0 // pred_check_branch
    %15 = sbr.rel (0) target = $region13
  $region12: #{_forward_device.3} parent=0 // pred_region
    _
  $region13: #{_forward_device.3} parent=0 // pred_fallthru
    _
  // Predicated region
  $region14: #{_forward_device.3} parent=0 // pred_check
    _
  $region15: #{_forward_device.3} parent=0 // pred_check_branch
    %17 = sbr.rel (0) target = $region17
  $region16: #{_forward_device.3} parent=0 // pred_region
    _
  $region17: #{_forward_device.3} parent=0 // pred_fallthru
    _
  // Predicated region
  $region18: #{_forward_device.3} parent=0 // pred_check
    _
  $region19: #{_forward_device.3} parent=0 // pred_check_branch
    %19 = sbr.rel (0) target = $region21
  $region20: #{_forward_device.3} parent=0 // pred_region
    _
  $region21: #{_forward_device.3} parent=0 // pred_fallthru
    _
  %v21 = vld [vmem:[%s0] sm:$0xff]
  %v22 = vld [vmem:[%s0 + $0x8] sm:$0xff]
  %v23 = vld [vmem:[%s0 + $0x10] sm:$0xff]
  %v24 = vld [vmem:[%s0 + $0x18] sm:$0xff]
  %v25 = vld [vmem:[%s0 + $0x20] sm:$0xff]
  %v26 = vld [vmem:[%s0 + $0x28] sm:$0xff]
  %v27 = vld [vmem:[%s2] sm:$0xf]
  %v28 = vld [vmem:[%s2 + $0x4] sm:$0xf]
  %v29 = vld [vmem:[%s2 + $0x8] sm:$0xf]
  %v30 = vld [vmem:[%s2 + $0xc] sm:$0xf]
  %v31 = vld [vmem:[%s2 + $0x10] sm:$0xf]
  %v32 = vld [vmem:[%s2 + $0x14] sm:$0xf]
  %v33 = vld [vmem:[%s2 + $0x18] sm:$0xf]
  %v34 = vld [vmem:[%s2 + $0x1c] sm:$0xf]
  %v35 = vld [vmem:[%s2 + $0x20] sm:$0xf]
  %v36 = vld [vmem:[%s2 + $0x24] sm:$0xf]
  %v37 = vld [vmem:[%s2 + $0x28] sm:$0xf]
  %v38 = vld [vmem:[%s2 + $0x2c] sm:$0xf]
  %v39 = vld [vmem:[%s2 + $0x30] sm:$0xf]
  %v40 = vld [vmem:[%s2 + $0x34] sm:$0xf]
  %v41 = vld [vmem:[%s2 + $0x38] sm:$0xf]
  %v42 = vld [vmem:[%s2 + $0x3c] sm:$0xf]
  %v43 = vld [vmem:[%s2 + $0x40] sm:$0xf]
  %v44 = vld [vmem:[%s2 + $0x44] sm:$0xf]
  %v45 = vld [vmem:[%s2 + $0x48] sm:$0xf]
  %v46 = vld [vmem:[%s2 + $0x4c] sm:$0xf]
  %v47 = vld [vmem:[%s2 + $0x50] sm:$0xf]
  %v48 = vld [vmem:[%s2 + $0x54] sm:$0xf]
  %v49 = vld [vmem:[%s2 + $0x58] sm:$0xf]
  %v50 = vld [vmem:[%s2 + $0x5c] sm:$0xf]
  %v51 = vld [vmem:[%s2 + $0x60] sm:$0xf]
  %v52 = vld [vmem:[%s2 + $0x64] sm:$0xf]
  %v53 = vld [vmem:[%s2 + $0x68] sm:$0xf]
  %v54 = vld [vmem:[%s1] sm:$0xf]
  %v55 = vld [vmem:[%s1 + $0x4] sm:$0xf]
  %v56 = vld [vmem:[%s1 + $0x8] sm:$0xf]
  %v57 = vld [vmem:[%s1 + $0xc] sm:$0xf]
  %v58 = vld [vmem:[%s1 + $0x10] sm:$0xf]
  %v59 = vld [vmem:[%s1 + $0x14] sm:$0xf]
  %v60 = vld [vmem:[%s3] sm:$0x3]
  %v67 = vunpack.c.l.b16 %v54
  %v68 = vunpack.c.l.b16 %v55
  %v69 = vunpack.c.l.b16 %v56
  %v70 = vunpack.c.l.b16 %v57
  %v71 = vunpack.c.l.b16 %v58
  %v72 = vunpack.c.l.b16 %v59
  %v73 = vpack.c.b16 %v68, %v67
  %v74 = vpack.c.b16 %v70, %v69
  %v75 = vpack.c.b16 %v72, %v71
  %vm76 = vcmask 31744
  %v78 = vsel %vm76, %v73, 0
  %v81 = vsel %vm76, %v74, 0
  %v84 = vsel %vm76, %v75, 0
  %vm86 = vcmask 1041408
  %v88 = vsel %vm86, %v60, 0
  %90 = vmatpush.bf16.msra.mxu0 0
  %91 = vmatpush.bf16.msra.mxu0 0
  %92 = vmatpush.bf16.msra.mxu0 0
  %93 = vmatpush.bf16.msra.mxu0 0
  %94 = vmatpush.bf16.msra.mxu0 0
  %95 = vmatpush.bf16.msra.mxu0 0
  %96 = vmatpush.bf16.msra.mxu0 0
  %97 = vmatpush.bf16.msra.mxu0 %v88
  %98 = vmatmul.bf16.gmra.mxu0 %v78
  %v99 = vpop.f32.mrf.mxu0
  %v100 = vadd.f32 0.0, %v99
  %v101 = vpop.f32.mrf.mxu0
  %v102 = vadd.f32 0.0, %v101
  %103 = vmatmul.bf16.gmra.mxu0 %v81
  %v104 = vpop.f32.mrf.mxu0
  %v105 = vadd.f32 0.0, %v104
  %v106 = vpop.f32.mrf.mxu0
  %v107 = vadd.f32 0.0, %v106
  %108 = vmatmul.bf16.gmra.mxu0 %v84
  %v109 = vpop.f32.mrf.mxu0
  %v110 = vadd.f32 0.0, %v109
  %v111 = vpop.f32.mrf.mxu0
  %v112 = vadd.f32 0.0, %v111
  %113 = vdwg.mxu0
  %v120 = vunpack.c.l.b16 %v21
  %v121 = vunpack.c.h.b16 %v21
  %v122 = vunpack.c.l.b16 %v22
  %v123 = vunpack.c.h.b16 %v22
  %v124 = vunpack.c.l.b16 %v23
  %v125 = vunpack.c.h.b16 %v23
  %v126 = vunpack.c.l.b16 %v24
  %v127 = vunpack.c.h.b16 %v24
  %v128 = vunpack.c.l.b16 %v25
  %v129 = vunpack.c.h.b16 %v25
  %v130 = vunpack.c.l.b16 %v26
  %v131 = vunpack.c.h.b16 %v26
  %v132 = vpack.c.b16 %v122, %v120
  %v133 = vpack.c.b16 %v123, %v121
  %v134 = vpack.c.b16 %v126, %v124
  %v135 = vpack.c.b16 %v127, %v125
  %v136 = vpack.c.b16 %v130, %v128
  %v137 = vpack.c.b16 %v131, %v129
  %v168 = vunpack.c.l.b16 %v27
  %v169 = vunpack.c.l.b16 %v28
  %v170 = vunpack.c.l.b16 %v29
  %v171 = vunpack.c.l.b16 %v30
  %v172 = vunpack.c.l.b16 %v31
  %v173 = vunpack.c.l.b16 %v32
  %v174 = vunpack.c.l.b16 %v33
  %v175 = vunpack.c.l.b16 %v34
  %v176 = vunpack.c.l.b16 %v35
  %v177 = vunpack.c.l.b16 %v36
  %v178 = vunpack.c.l.b16 %v37
  %v179 = vunpack.c.l.b16 %v38
  %v180 = vunpack.c.l.b16 %v39
  %v181 = vunpack.c.l.b16 %v40
  %v182 = vunpack.c.l.b16 %v41
  %v183 = vunpack.c.l.b16 %v42
  %v184 = vunpack.c.l.b16 %v43
  %v185 = vunpack.c.l.b16 %v44
  %v186 = vunpack.c.l.b16 %v45
  %v187 = vunpack.c.l.b16 %v46
  %v188 = vunpack.c.l.b16 %v47
  %v189 = vunpack.c.l.b16 %v48
  %v190 = vunpack.c.l.b16 %v49
  %v191 = vunpack.c.l.b16 %v50
  %v192 = vunpack.c.l.b16 %v51
  %v193 = vunpack.c.l.b16 %v52
  %v194 = vunpack.c.l.b16 %v53
  %v195 = vpack.c.b16 %v169, %v168
  %v196 = vpack.c.b16 %v171, %v170
  %v197 = vpack.c.b16 %v173, %v172
  %v198 = vpack.c.b16 %v175, %v174
  %v199 = vpack.c.b16 %v177, %v176
  %v200 = vpack.c.b16 %v179, %v178
  %v201 = vpack.c.b16 %v181, %v180
  %v202 = vpack.c.b16 %v183, %v182
  %v203 = vpack.c.b16 %v185, %v184
  %v204 = vpack.c.b16 %v187, %v186
  %v205 = vpack.c.b16 %v189, %v188
  %v206 = vpack.c.b16 %v191, %v190
  %v207 = vpack.c.b16 %v193, %v192
  %v208 = vpack.c.b16 %v194, %v194
  %vm222 = vcmask 719872
  %v224 = vsel %vm222, %v133, 0
  %v227 = vsel %vm222, %v135, 0
  %v230 = vsel %vm222, %v137, 0
  %vm232 = vcmask 1043456
  %v234 = vsel %vm232, %v208, 0
  %236 = vmatpush.bf16.msra.mxu0 %v202
  %237 = vmatpush.bf16.msra.mxu0 %v201
  %238 = vmatpush.bf16.msra.mxu0 %v200
  %239 = vmatpush.bf16.msra.mxu0 %v199
  %240 = vmatpush.bf16.msra.mxu0 %v198
  %241 = vmatpush.bf16.msra.mxu0 %v197
  %242 = vmatpush.bf16.msra.mxu0 %v196
  %243 = vmatpush.bf16.msra.mxu0 %v195
  %244 = vmatmul.bf16.gmra.mxu0 %v132
  %v245 = vpop.f32.mrf.mxu0
  %v246 = vadd.f32 %v100, %v245
  %v247 = vpop.f32.mrf.mxu0
  %v248 = vadd.f32 %v102, %v247
  %249 = vmatmul.bf16.gmra.mxu0 %v134
  %v250 = vpop.f32.mrf.mxu0
  %v251 = vadd.f32 %v105, %v250
  %v252 = vpop.f32.mrf.mxu0
  %v253 = vadd.f32 %v107, %v252
  %254 = vmatmul.bf16.gmra.mxu0 %v136
  %v255 = vpop.f32.mrf.mxu0
  %v256 = vadd.f32 %v110, %v255
  %v257 = vpop.f32.mrf.mxu0
  %v258 = vadd.f32 %v112, %v257
  %259 = vdwg.mxu0
  %260 = vmatpush.bf16.msra.mxu0 0
  %261 = vmatpush.bf16.msra.mxu0 0
  %262 = vmatpush.bf16.msra.mxu0 %v234
  %263 = vmatpush.bf16.msra.mxu0 %v207
  %264 = vmatpush.bf16.msra.mxu0 %v206
  %265 = vmatpush.bf16.msra.mxu0 %v205
  %266 = vmatpush.bf16.msra.mxu0 %v204
  %267 = vmatpush.bf16.msra.mxu0 %v203
  %268 = vmatmul.bf16.gmra.mxu0 %v224
  %v269 = vpop.f32.mrf.mxu0
  %v270 = vadd.f32 %v246, %v269
  %v271 = vpop.f32.mrf.mxu0
  %v272 = vadd.f32 %v248, %v271
  %273 = vmatmul.bf16.gmra.mxu0 %v227
  %v274 = vpop.f32.mrf.mxu0
  %v275 = vadd.f32 %v251, %v274
  %v276 = vpop.f32.mrf.mxu0
  %v277 = vadd.f32 %v253, %v276
  %278 = vmatmul.bf16.gmra.mxu0 %v230
  %v279 = vpop.f32.mrf.mxu0
  %v280 = vadd.f32 %v256, %v279
  %v281 = vpop.f32.mrf.mxu0
  %v282 = vadd.f32 %v258, %v281
  %283 = vdwg.mxu0
  %v284 = vld [vmem:[%s4] sm:$0x1]
  %v286 = vperm.slane %v284, 0
  %v288 = vadd.f32 %v270, %v286
  %v289 = vadd.f32 %v272, %v286
  %v290 = vadd.f32 %v275, %v286
  %v291 = vadd.f32 %v277, %v286
  %v292 = vadd.f32 %v280, %v286
  %v293 = vadd.f32 %v282, %v286
  %v294 = vmax.f32 %v288, 0.0
  %v295 = vmax.f32 %v289, 0.0
  %v296 = vmax.f32 %v290, 0.0
  %v297 = vmax.f32 %v291, 0.0
  %v298 = vmax.f32 %v292, 0.0
  %v299 = vmax.f32 %v293, 0.0
  %vm300 = vcmask 64512
  %301 = vst.msk [vmem:[%s5] sm:$0xff] %vm300, %v294
  %302 = vst.msk [vmem:[%s5 + $0x8] sm:$0xff] %vm300, %v295
  %303 = vst.msk [vmem:[%s5 + $0x10] sm:$0xff] %vm300, %v296
  %304 = vst.msk [vmem:[%s5 + $0x18] sm:$0xff] %vm300, %v297
  %305 = vst.msk [vmem:[%s5 + $0x20] sm:$0xff] %vm300, %v298
  %306 = vst.msk [vmem:[%s5 + $0x28] sm:$0xff] %vm300, %v299
  // Predicated region
  $region22: #{_forward_device.3} parent=0 // pred_check
    _
  $region23: #{_forward_device.3} parent=0 // pred_check_branch
    %308 = sbr.rel (0) target = $region25
  $region24: #{_forward_device.3} parent=0 // pred_region
    _
  $region25: #{_forward_device.3} parent=0 // pred_fallthru
    _
  // Predicated region
  $region26: #{_forward_device.3} parent=0 // pred_check
    _
  $region27: #{_forward_device.3} parent=0 // pred_check_branch
    %310 = sbr.rel (0) target = $region29
  $region28: #{_forward_device.3} parent=0 // pred_region
    _
  $region29: #{_forward_device.3} parent=0 // pred_fallthru
    _

</llo_original>
